<compile_context>
chip_gen: v7x
topology: tpu7x:2x2x1
jax: 0.10.0
libtpu: 0.0.40
codegen_flags: <defaults>
</compile_context>

<pallas_src>
import jax
import jax.numpy as jnp
from jax.experimental import pallas as pl
from jax.experimental.pallas import tpu as pltpu

EPS = 1e-10
BETA = 1.0               # AvULoss(beta=1)
DEFAULT_BLOCK_N = 8192   # batch tile on the lane axis (~0.5 MiB/buffer at C<=16)


def _avu_loss_kernel(logits_ref, labels_ref, th_ref, n_ref, out_ref,
                     num_acc, den_acc):
    """Processes one (C, TN) batch tile and accumulates the two AvU sums."""
    i = pl.program_id(0)
    tn = logits_ref.shape[1]

    @pl.when(i == 0)
    def _init():
        num_acc[...] = jnp.zeros_like(num_acc)
        den_acc[...] = jnp.zeros_like(den_acc)

    # Lane-dense layout: classes on sublanes, batch on lanes.
    x = logits_ref[...].astype(jnp.float32)          # (C, TN)  cast in-kernel
    labels = labels_ref[...]                          # (1, TN) int32
    th = th_ref[0]                                    # f32 scalar (SMEM)
    n_valid = n_ref[0]                                # i32 scalar (SMEM)

    # --- softmax statistics over the class (sublane) axis -------------------
    m = jnp.max(x, axis=0, keepdims=True)             # (1, TN)
    xm = x - m
    e = jnp.exp(xm)                                   # (C, TN)  only full-size EUP op
    z = jnp.sum(e, axis=0, keepdims=True)             # (1, TN)
    inv_z = 1.0 / z

    e_max = jnp.max(e, axis=0, keepdims=True)         # (1, TN)
    conf = e_max * inv_z                              # max softmax probability

    # argmax with first-index tie-breaking (matches torch.max).
    num_classes = x.shape[0]
    row = jax.lax.broadcasted_iota(jnp.int32, x.shape, 0)
    pred = jnp.min(jnp.where(e == e_max, row, num_classes),
                   axis=0, keepdims=True)             # (1, TN) int32

    # Predictive uncertainty via the logZ identity:
    #   H(p) = log(sum e) - sum(e * (x - m)) / sum(e)
    # so only a (1, TN) log remains instead of a full (C, TN) log pass.
    unc = jnp.log(z) - jnp.sum(e * xm, axis=0, keepdims=True) * inv_z
    t = jnp.tanh(unc)                                 # (1, TN)

    acc = labels == pred                              # accurate?
    certain = unc <= th                               # certain?

    # Fused form of the four masked sums:
    #   w = (conf if accurate else 1-conf) * ((1-t) if certain else t)
    #   numerator   = sum(w where accurate == certain)  (= n_ac + n_iu)
    #   denominator = sum(w)                            (= n_ac+n_au+n_ic+n_iu)
    a_w = jnp.where(acc, conf, 1.0 - conf)
    c_w = jnp.where(certain, 1.0 - t, t)
    w = a_w * c_w

    # Mask the ragged tail of the last batch tile.
    col = jax.lax.broadcasted_iota(jnp.int32, w.shape, 1) + i * tn
    w = jnp.where(col < n_valid, w, 0.0)

    num_acc[...] += jnp.sum(jnp.where(acc == certain, w, 0.0),
                            axis=1, keepdims=True)
    den_acc[...] += jnp.sum(w, axis=1, keepdims=True)

    @pl.when(i == pl.num_programs(0) - 1)
    def _finalize():
        avu = num_acc[...] / (den_acc[...] + EPS)
        out_ref[...] = -1.0 * BETA * jnp.log(avu + EPS)


def avu_loss(logits, labels, optimal_uncertainty_threshold, *,
             block_n=DEFAULT_BLOCK_N):
    """Pallas TPU implementation of AvULoss.forward(logits, labels, th, type=0)."""
    # TODO(synk): type=1 (model uncertainty) branch of forward is not implemented.
    n, c = logits.shape

    # Lane-dense layout: logits -> (C, N), labels -> (1, N).  Keep the input
    # dtype (cast happens inside the kernel, free VPU work, no extra HBM copy).
    logits_t = jnp.transpose(logits)
    labels2d = labels.astype(jnp.int32).reshape(1, n)

    # Lane-aligned batch tile; a single tile for small batches.
    tn = min(int(block_n), pl.cdiv(n, 128) * 128)
    n_pad = pl.cdiv(n, tn) * tn
    if n_pad != n:
        logits_t = jnp.pad(logits_t, ((0, 0), (0, n_pad - n)))
        labels2d = jnp.pad(labels2d, ((0, 0), (0, n_pad - n)),
                           constant_values=-1)

    th = jnp.asarray([optimal_uncertainty_threshold], dtype=jnp.float32)
    n_arr = jnp.asarray([n], dtype=jnp.int32)

    out = pl.pallas_call(
        _avu_loss_kernel,
        out_shape=jax.ShapeDtypeStruct((1, 1), jnp.float32),
        grid_spec=pltpu.PrefetchScalarGridSpec(
            num_scalar_prefetch=0,
            grid=(n_pad // tn,),
            in_specs=[
                pl.BlockSpec((c, tn), lambda i: (0, i)),            # logits (C, N)
                pl.BlockSpec((1, tn), lambda i: (0, i)),            # labels (1, N)
                pl.BlockSpec(memory_space=pltpu.MemorySpace.SMEM),  # threshold
                pl.BlockSpec(memory_space=pltpu.MemorySpace.SMEM),  # valid batch size
            ],
            out_specs=pl.BlockSpec((1, 1), lambda i: (0, 0)),
            scratch_shapes=[
                pltpu.VMEM((1, 1), jnp.float32),   # numerator accumulator
                pltpu.VMEM((1, 1), jnp.float32),   # denominator accumulator
            ],
        ),
        compiler_params=pltpu.CompilerParams(
            dimension_semantics=("arbitrary",),    # batch axis is a reduction
        ),
    )(logits_t, labels2d, th, n_arr)
    return out.reshape(1)   # matches torch output shape (1,)


def avu_loss_ref(logits, labels, th):
    """Pure-JAX reference mirroring the PyTorch forward (type=0)."""
    probs = jax.nn.softmax(logits.astype(jnp.float32), axis=1)
    conf = jnp.max(probs, axis=1)
    pred = jnp.argmax(probs, axis=1)
    unc = -jnp.sum(probs * jnp.log(probs + EPS), axis=-1)
    t = jnp.tanh(unc)
    acc = labels.astype(jnp.int32) == pred.astype(jnp.int32)
    certain = unc <= th
    n_ac = jnp.sum(jnp.where(acc & certain, conf * (1.0 - t), 0.0))
    n_au = jnp.sum(jnp.where(acc & (~certain), conf * t, 0.0))
    n_ic = jnp.sum(jnp.where((~acc) & certain, (1.0 - conf) * (1.0 - t), 0.0))
    n_iu = jnp.sum(jnp.where((~acc) & (~certain), (1.0 - conf) * t, 0.0))
    avu = (n_ac + n_iu) / (n_ac + n_au + n_ic + n_iu + EPS)
    return (-1.0 * BETA * jnp.log(avu + EPS)).reshape(1)


if __name__ == "__main__":
    key = jax.random.PRNGKey(0)
    k1, k2, k3, k4 = jax.random.split(key, 4)

    # Small case: single tile.
    n1, c1 = 16, 10
    logits1 = jax.random.normal(k1, (n1, c1), dtype=jnp.float32) * 2.0
    labels1 = jax.random.randint(k2, (n1,), 0, c1, dtype=jnp.int32)
    th1 = 1.5

    loss1 = avu_loss(logits1, labels1, th1)
    jax.block_until_ready(loss1)
    ref1 = avu_loss_ref(logits1, labels1, th1)
    assert loss1.shape == (1,)
    assert jnp.allclose(loss1, ref1, atol=5e-5, rtol=5e-5), (loss1, ref1)

    # Larger case exercising the batch grid + ragged-tail masking (3 tiles).
    n2, c2 = 300, 10
    logits2 = jax.random.normal(k3, (n2, c2), dtype=jnp.float32) * 2.0
    labels2 = jax.random.randint(k4, (n2,), 0, c2, dtype=jnp.int32)
    th2 = 1.2

    loss2 = avu_loss(logits2, labels2, th2, block_n=128)
    jax.block_until_ready(loss2)
    ref2 = avu_loss_ref(logits2, labels2, th2)
    assert jnp.allclose(loss2, ref2, atol=5e-5, rtol=5e-5), (loss2, ref2)

    print("KERNEL_OK")
</pallas_src>

<mosaic_0001>
module attributes {stable_mosaic.version = 11 : i64} {
  func.func @_avu_loss_kernel(%arg0: i32, %arg1: memref<10x128xf32, #tpu.memory_space<vmem>>, %arg2: memref<1x128xi32, #tpu.memory_space<vmem>>, %arg3: memref<1xf32, #tpu.memory_space<smem>>, %arg4: memref<1xi32, #tpu.memory_space<smem>>, %arg5: memref<1x1xf32, #tpu.memory_space<vmem>>, %arg6: memref<1x1xf32, #tpu.memory_space<vmem>>, %arg7: memref<1x1xf32, #tpu.memory_space<vmem>>) attributes {dimension_semantics = [#tpu.dimension_semantics<arbitrary>], iteration_bounds = array<i64: 1>, scalar_prefetch = 0 : i64, scratch_operands = 2 : i64, tpu.core_type = #tpu.core_type<tc>, window_params = [{transform_indices = @transform_0, window_bounds = array<i64: 10, 128>}, {transform_indices = @transform_1, window_bounds = array<i64: 1, 128>}, {transform_indices = @transform_2, window_bounds = array<i64: 1>}, {transform_indices = @transform_3, window_bounds = array<i64: 1>}, {pipeline_mode = #tpu.pipeline_mode<synchronous>, transform_indices = @transform_4, window_bounds = array<i64: 1, 1>}]} {
    %c0_i32 = arith.constant 0 : i32
    %0 = arith.cmpi eq, %arg0, %c0_i32 : i32
    %1 = arith.extui %0 : i1 to i32
    %c0_i32_0 = arith.constant 0 : i32
    %2 = arith.cmpi ne, %1, %c0_i32_0 : i32
    scf.if %2 {
      %cst_28 = arith.constant 0.000000e+00 : f32
      %68 = vector.broadcast %cst_28 : f32 to vector<1x1xf32>
      %c0_29 = arith.constant 0 : index
      %c0_30 = arith.constant 0 : index
      %69 = vector.load %arg6[%c0_29, %c0_30] : memref<1x1xf32, #tpu.memory_space<vmem>>, vector<1x1xf32>
      tpu.vector_store %arg6[%c0_29, %c0_30], %68 {strides = array<i32>} : memref<1x1xf32, #tpu.memory_space<vmem>>, vector<1x1xf32>,
      %cst_31 = arith.constant 0.000000e+00 : f32
      %70 = vector.broadcast %cst_31 : f32 to vector<1x1xf32>
      %c0_32 = arith.constant 0 : index
      %c0_33 = arith.constant 0 : index
      %71 = vector.load %arg7[%c0_32, %c0_33] : memref<1x1xf32, #tpu.memory_space<vmem>>, vector<1x1xf32>
      tpu.vector_store %arg7[%c0_32, %c0_33], %70 {strides = array<i32>} : memref<1x1xf32, #tpu.memory_space<vmem>>, vector<1x1xf32>,
    } else {
    }
    %c0 = arith.constant 0 : index
    %c0_1 = arith.constant 0 : index
    %3 = vector.load %arg1[%c0, %c0_1] : memref<10x128xf32, #tpu.memory_space<vmem>>, vector<10x128xf32>
    %c0_2 = arith.constant 0 : index
    %c0_3 = arith.constant 0 : index
    %4 = vector.load %arg2[%c0_2, %c0_3] : memref<1x128xi32, #tpu.memory_space<vmem>>, vector<1x128xi32>
    %c0_4 = arith.constant 0 : index
    %5 = memref.load %arg3[%c0_4] : memref<1xf32, #tpu.memory_space<smem>>
    %c0_5 = arith.constant 0 : index
    %6 = memref.load %arg4[%c0_5] : memref<1xi32, #tpu.memory_space<smem>>
    %cst = arith.constant dense<0xFF800000> : vector<128xf32>
    %7 = vector.multi_reduction <maximumf>, %3, %cst [0] : vector<10x128xf32> to vector<128xf32>
    %8 = vector.shape_cast %7 : vector<128xf32> to vector<1x128xf32>
    %9 = vector.broadcast %8 : vector<1x128xf32> to vector<10x128xf32>
    %10 = arith.subf %3, %9 : vector<10x128xf32>
    %11 = math.exp %10 : vector<10x128xf32>
    %cst_6 = arith.constant dense<0.000000e+00> : vector<128xf32>
    %12 = vector.multi_reduction <add>, %11, %cst_6 [0] : vector<10x128xf32> to vector<128xf32>
    %13 = vector.shape_cast %12 : vector<128xf32> to vector<1x128xf32>
    %cst_7 = arith.constant 1.000000e+00 : f32
    %14 = vector.broadcast %cst_7 : f32 to vector<1x128xf32>
    %15 = arith.divf %14, %13 : vector<1x128xf32>
    %cst_8 = arith.constant dense<0xFF800000> : vector<128xf32>
    %16 = vector.multi_reduction <maximumf>, %11, %cst_8 [0] : vector<10x128xf32> to vector<128xf32>
    %17 = vector.shape_cast %16 : vector<128xf32> to vector<1x128xf32>
    %18 = arith.mulf %17, %15 : vector<1x128xf32>
    %19 = tpu.iota {dimensions = array<i32: 0>} : vector<10x128xi32>
    %20 = vector.broadcast %17 : vector<1x128xf32> to vector<10x128xf32>
    %21 = arith.cmpf oeq, %11, %20 : vector<10x128xf32>
    %c10_i32 = arith.constant 10 : i32
    %22 = vector.broadcast %c10_i32 : i32 to vector<10x128xi32>
    %23 = arith.select %21, %19, %22 : vector<10x128xi1>, vector<10x128xi32>
    %cst_9 = arith.constant dense<2147483647> : vector<128xi32>
    %24 = vector.multi_reduction <minsi>, %23, %cst_9 [0] : vector<10x128xi32> to vector<128xi32>
    %25 = vector.shape_cast %24 : vector<128xi32> to vector<1x128xi32>
    %26 = math.log %13 : vector<1x128xf32>
    %27 = arith.mulf %11, %10 : vector<10x128xf32>
    %cst_10 = arith.constant dense<0.000000e+00> : vector<128xf32>
    %28 = vector.multi_reduction <add>, %27, %cst_10 [0] : vector<10x128xf32> to vector<128xf32>
    %29 = vector.shape_cast %28 : vector<128xf32> to vector<1x128xf32>
    %30 = arith.mulf %29, %15 : vector<1x128xf32>
    %31 = arith.subf %26, %30 : vector<1x128xf32>
    %32 = math.tanh %31 : vector<1x128xf32>
    %33 = arith.cmpi eq, %4, %25 : vector<1x128xi32>
    %34 = vector.broadcast %5 : f32 to vector<1x128xf32>
    %35 = arith.cmpf ole, %31, %34 : vector<1x128xf32>
    %cst_11 = arith.constant 1.000000e+00 : f32
    %36 = vector.broadcast %cst_11 : f32 to vector<1x128xf32>
    %37 = arith.subf %36, %18 : vector<1x128xf32>
    %38 = arith.select %33, %18, %37 : vector<1x128xi1>, vector<1x128xf32>
    %cst_12 = arith.constant 1.000000e+00 : f32
    %39 = vector.broadcast %cst_12 : f32 to vector<1x128xf32>
    %40 = arith.subf %39, %32 : vector<1x128xf32>
    %41 = arith.select %35, %40, %32 : vector<1x128xi1>, vector<1x128xf32>
    %42 = arith.mulf %38, %41 : vector<1x128xf32>
    %43 = tpu.iota {dimensions = array<i32: 1>} : vector<1x128xi32>
    %c128_i32 = arith.constant 128 : i32
    %44 = arith.muli %arg0, %c128_i32 : i32
    %45 = vector.broadcast %44 : i32 to vector<1x128xi32>
    %46 = arith.addi %43, %45 : vector<1x128xi32>
    %47 = vector.broadcast %6 : i32 to vector<1x128xi32>
    %48 = arith.cmpi slt, %46, %47 : vector<1x128xi32>
    %cst_13 = arith.constant 0.000000e+00 : f32
    %49 = vector.broadcast %cst_13 : f32 to vector<1x128xf32>
    %50 = arith.select %48, %42, %49 : vector<1x128xi1>, vector<1x128xf32>
    %c0_14 = arith.constant 0 : index
    %c0_15 = arith.constant 0 : index
    %51 = vector.load %arg6[%c0_14, %c0_15] : memref<1x1xf32, #tpu.memory_space<vmem>>, vector<1x1xf32>
    %52 = arith.xori %33, %35 : vector<1x128xi1>
    %cst_16 = arith.constant dense<true> : vector<1x128xi1>
    %53 = arith.xori %52, %cst_16 : vector<1x128xi1>
    %cst_17 = arith.constant 0.000000e+00 : f32
    %54 = vector.broadcast %cst_17 : f32 to vector<1x128xf32>
    %55 = arith.select %53, %50, %54 : vector<1x128xi1>, vector<1x128xf32>
    %cst_18 = arith.constant dense<0.000000e+00> : vector<1xf32>
    %56 = vector.multi_reduction <add>, %55, %cst_18 [1] : vector<1x128xf32> to vector<1xf32>
    %57 = vector.shape_cast %56 : vector<1xf32> to vector<1x1xf32>
    %58 = arith.addf %51, %57 : vector<1x1xf32>
    %c0_19 = arith.constant 0 : index
    %c0_20 = arith.constant 0 : index
    %59 = vector.load %arg6[%c0_19, %c0_20] : memref<1x1xf32, #tpu.memory_space<vmem>>, vector<1x1xf32>
    tpu.vector_store %arg6[%c0_19, %c0_20], %58 {strides = array<i32>} : memref<1x1xf32, #tpu.memory_space<vmem>>, vector<1x1xf32>,
    %c0_21 = arith.constant 0 : index
    %c0_22 = arith.constant 0 : index
    %60 = vector.load %arg7[%c0_21, %c0_22] : memref<1x1xf32, #tpu.memory_space<vmem>>, vector<1x1xf32>
    %cst_23 = arith.constant dense<0.000000e+00> : vector<1xf32>
    %61 = vector.multi_reduction <add>, %50, %cst_23 [1] : vector<1x128xf32> to vector<1xf32>
    %62 = vector.shape_cast %61 : vector<1xf32> to vector<1x1xf32>
    %63 = arith.addf %60, %62 : vector<1x1xf32>
    %c0_24 = arith.constant 0 : index
    %c0_25 = arith.constant 0 : index
    %64 = vector.load %arg7[%c0_24, %c0_25] : memref<1x1xf32, #tpu.memory_space<vmem>>, vector<1x1xf32>
    tpu.vector_store %arg7[%c0_24, %c0_25], %63 {strides = array<i32>} : memref<1x1xf32, #tpu.memory_space<vmem>>, vector<1x1xf32>,
    %c0_i32_26 = arith.constant 0 : i32
    %65 = arith.cmpi eq, %arg0, %c0_i32_26 : i32
    %66 = arith.extui %65 : i1 to i32
    %c0_i32_27 = arith.constant 0 : i32
    %67 = arith.cmpi ne, %66, %c0_i32_27 : i32
    scf.if %67 {
      %c0_28 = arith.constant 0 : index
      %c0_29 = arith.constant 0 : index
      %68 = vector.load %arg6[%c0_28, %c0_29] : memref<1x1xf32, #tpu.memory_space<vmem>>, vector<1x1xf32>
      %c0_30 = arith.constant 0 : index
      %c0_31 = arith.constant 0 : index
      %69 = vector.load %arg7[%c0_30, %c0_31] : memref<1x1xf32, #tpu.memory_space<vmem>>, vector<1x1xf32>
      %cst_32 = arith.constant 1.000000e-10 : f32
      %70 = vector.broadcast %cst_32 : f32 to vector<1x1xf32>
      %71 = arith.addf %69, %70 : vector<1x1xf32>
      %72 = arith.divf %68, %71 : vector<1x1xf32>
      %cst_33 = arith.constant 1.000000e-10 : f32
      %73 = vector.broadcast %cst_33 : f32 to vector<1x1xf32>
      %74 = arith.addf %72, %73 : vector<1x1xf32>
      %75 = math.log %74 : vector<1x1xf32>
      %cst_34 = arith.constant -1.000000e+00 : f32
      %76 = vector.broadcast %cst_34 : f32 to vector<1x1xf32>
      %77 = arith.mulf %76, %75 : vector<1x1xf32>
      %c0_35 = arith.constant 0 : index
      %c0_36 = arith.constant 0 : index
      %78 = vector.load %arg5[%c0_35, %c0_36] : memref<1x1xf32, #tpu.memory_space<vmem>>, vector<1x1xf32>
      tpu.vector_store %arg5[%c0_35, %c0_36], %77 {strides = array<i32>} : memref<1x1xf32, #tpu.memory_space<vmem>>, vector<1x1xf32>,
    } else {
    }
    return
  }
  func.func @transform_0(%arg0: i32) -> (i32, i32) {
    %c0_i32 = arith.constant 0 : i32
    %c0_i32_0 = arith.constant 0 : i32
    return %c0_i32, %arg0 : i32, i32
  }
  func.func @transform_1(%arg0: i32) -> (i32, i32) {
    %c0_i32 = arith.constant 0 : i32
    %c0_i32_0 = arith.constant 0 : i32
    return %c0_i32, %arg0 : i32, i32
  }
  func.func @transform_2(%arg0: i32) -> i32 {
    %c0_i32 = arith.constant 0 : i32
    %c0_i32_0 = arith.constant 0 : i32
    return %c0_i32 : i32
  }
  func.func @transform_3(%arg0: i32) -> i32 {
    %c0_i32 = arith.constant 0 : i32
    %c0_i32_0 = arith.constant 0 : i32
    return %c0_i32 : i32
  }
  func.func @transform_4(%arg0: i32) -> (i32, i32) {
    %c0_i32 = arith.constant 0 : i32
    %c0_i32_0 = arith.constant 0 : i32
    %c0_i32_1 = arith.constant 0 : i32
    return %c0_i32, %c0_i32_0 : i32, i32
  }
}

</mosaic_0001>

<llo_original>
// kernel: tpu_custom_call.1
$region0: #{tpu_custom_call.1}
  #allocation0 [shape = 'u32[]', space=smem, size = 0x4, offset = 0x4, fixed_abs, tag = 'smem constant byte address 0x4 - core index']
  #allocation1 [shape = 'u32[144,128]{1,0:T(1,128)}', space=vmem, size = 0x12000, scoped, tag = 'internal scratch']
  #allocation2 [shape = 'f32[1,1]{1,0:T(1,128)}', space=vmem, size = 0x200, scoped, tag = 'scratch operand']
  #allocation3 [shape = 'f32[1,1]{1,0:T(1,128)}', space=vmem, size = 0x200, scoped, tag = 'scratch operand']
  #allocation4 [shape = 'f32[1]{0:T(128)S(6)}', space=smem, size = 0x200, scoped, tag = 'scoped memory for tpu_custom_call.1']
  #allocation5 [shape = 's32[1]{0:T(128)S(6)}', space=smem, size = 0x200, scoped, tag = 'scoped memory for tpu_custom_call.1']
  %s0 = inlined_call_operand.hbm [shape: f32[10,128], index: 0, kind: input, shape index: {}]
  %s1 = inlined_call_operand.vmem [shape: s32[1,128], index: 1, kind: input, shape index: {}]
  %s2 = inlined_call_operand.<no memory space> [shape: f32[1], index: 2, kind: input, shape index: {}]
  %s3 = inlined_call_operand.<no memory space> [shape: s32[1], index: 3, kind: input, shape index: {}]
  %s4 = inlined_call_operand.hbm [shape: f32[1,1], index: 4, kind: output, shape index: {}]
  %s5 = sld [smem:[#allocation0]]
  $region38: #{tpu_custom_call.1} parent=0
    _
  %s7 = ssub.s32 1, %s5
  %s8 = scalar_select 0, %s7, %s5
  %9 = sst [smem:[#allocation4]] %s2
  %10 = sst [smem:[#allocation5]] %s3
  $region1: #{tpu_custom_call.1} parent=0
    #allocation6 [shape = 'u8[8192]{0}', space=vmem, size = 0x2000, scoped, tag = 'input window, operand 0, single buffered']
    #allocation7 [shape = 's32[1]{0}', space=sflag, size = 0x4, scoped, tag = 'scoped memory for tpu_custom_call.1']
    #allocation8 [shape = 's32[1]{0}', space=sflag, size = 0x4, scoped, tag = 'scoped memory for tpu_custom_call.1']
    #allocation9 [shape = 'u8[512]{0}', space=vmem, size = 0x400, scoped, tag = 'output window, operand 0, single buffered']
    %11 = vsyncpa [#allocation7], 0
    %12 = vsyncpa [#allocation8], 0
    // Predicated region
    $region2: #{tpu_custom_call.1} parent=1 // pred_check
      _
    $region3: #{tpu_custom_call.1} parent=1 // pred_check_branch
      %14 = sbr.rel (0) target = $region5
    $region4: #{tpu_custom_call.1} parent=1 // pred_region
      %s16 = ssub.s32 256, 256
      %17 = vsyncadd [#allocation7], %s16
      %s18 = sshll.u32 [#allocation6], 4
      %s19 = int_to_ptr.vmem [resolvable:$true] %s18
      %24 = dma.hbm_to_vmem [thread:$0]  %s0, 256, %s19, [#allocation7], 128, 128, 8
    $region5: #{tpu_custom_call.1} parent=1 // pred_fallthru
      _
    // Predicated region
    $region6: #{tpu_custom_call.1} parent=1 // pred_check
      _
    $region7: #{tpu_custom_call.1} parent=1 // pred_check_branch
      %26 = sbr.rel (0) target = $region9
    $region8: #{tpu_custom_call.1} parent=1 // pred_region
      _
    $region9: #{tpu_custom_call.1} parent=1 // pred_fallthru
      _
    // Predicated region
    $region10: #{tpu_custom_call.1} parent=1 // pred_check
      _
    $region11: #{tpu_custom_call.1} parent=1 // pred_check_branch
      %28 = sbr.rel (0) target = $region13
    $region12: #{tpu_custom_call.1} parent=1 // pred_region
      _
    $region13: #{tpu_custom_call.1} parent=1 // pred_fallthru
      _
    // Predicated region
    $region14: #{tpu_custom_call.1} parent=1 // pred_check
      _
    $region15: #{tpu_custom_call.1} parent=1 // pred_check_branch
      %30 = sbr.rel (0) target = $region17
    $region16: #{tpu_custom_call.1} parent=1 // pred_region
      _
    $region17: #{tpu_custom_call.1} parent=1 // pred_fallthru
      _
    // Predicated region
    $region18: #{tpu_custom_call.1} parent=1 // pred_check
      _
    $region19: #{tpu_custom_call.1} parent=1 // pred_check_branch
      %32 = sbr.rel (0) target = $region21
    $region20: #{tpu_custom_call.1} parent=1 // pred_region
      %33 = dma.done [#allocation7], 256
    $region21: #{tpu_custom_call.1} parent=1 // pred_fallthru
      _
    %p34 = scmp.eq.s32.totalorder 0, 0
    // Predicated region
    $region22: #{tpu_custom_call.1} parent=1 // pred_check
      %p35 = pneg %p34
    $region23: #{tpu_custom_call.1} parent=1 // pred_check_branch
      %37 = sbr.rel (%p35) target = $region25
    $region24: #{tpu_custom_call.1} parent=1 // pred_region
      %vm38 = vcmask 0
      %39 = vst.msk [vmem:[#allocation2] sm:$0x1] %vm38, 0.0
      %40 = vst.msk [vmem:[#allocation3] sm:$0x1] %vm38, 0.0
    $region25: #{tpu_custom_call.1} parent=1 // pred_fallthru
      _
    %v41 = vld [vmem:[#allocation6] sm:$0xff]
    %v42 = vld [vmem:[#allocation6 + $0x8] sm:$0x3]
    %v43 = vld [vmem:[%s1] sm:$0x1]
    %s44 = sld [smem:[#allocation4]]
    %s45 = sld [smem:[#allocation5]]
    %vm46 = vcmask 1041408
    %v47 = vsel %vm46, %v42, -inf
    %v48 = vmax.f32 %v41, %v47
    %v49 = vrot.slane %v48, 4
    %v50 = vmax.f32 %v48, %v49
    %v51 = vrot.slane %v50, 2
    %v52 = vmax.f32 %v50, %v51
    %v53 = vrot.slane %v52, 1
    %v54 = vmax.f32 %v52, %v53
    %v55 = vsub.f32 %v41, %v54
    %v56 = vsub.f32 %v42, %v54
    %v57 = vmul.f32 %v55, 1.442695
    %v58 = vpow.pop %v57
    %v59 = vmul.f32 %v56, 1.442695
    %v60 = vpow.pop %v59
    %v61 = vsel %vm46, %v60, 0.0
    %v62 = vadd.f32 %v58, %v61
    %v63 = vrot.slane %v62, 4
    %v64 = vadd.f32 %v62, %v63
    %v65 = vrot.slane %v64, 2
    %v66 = vadd.f32 %v64, %v65
    %v67 = vrot.slane %v66, 1
    %v68 = vadd.f32 %v66, %v67
    %v69 = vrcp.pop %v68
    %v70 = vmul.f32 1.0, %v69
    %v71 = vsel %vm46, %v60, -inf
    %v72 = vmax.f32 %v58, %v71
    %v73 = vrot.slane %v72, 4
    %v74 = vmax.f32 %v72, %v73
    %v75 = vrot.slane %v74, 2
    %v76 = vmax.f32 %v74, %v75
    %v77 = vrot.slane %v76, 1
    %v78 = vmax.f32 %v76, %v77
    %v79 = vmul.f32 %v78, %v70
    %v80 = vlaneseq
    %v81 = vshrl.u32 %v80, 7
    %v82 = vadd.s32 %v81, 8
    %vm83 = vcmp.eq.f32.partialorder %v58, %v78
    %vm84 = vcmp.eq.f32.partialorder %v60, %v78
    %v85 = vsel %vm83, %v81, 10
    %v86 = vsel %vm84, %v82, 10
    %v87 = vsel %vm46, %v86, 2147483647
    %vm88 = vcmp.lt.s32.totalorder %v85, %v87
    %v89 = vsel %vm88, %v85, %v87
    %v90 = vrot.slane %v89, 4
    %vm91 = vcmp.lt.s32.totalorder %v89, %v90
    %v92 = vsel %vm91, %v89, %v90
    %v93 = vrot.slane %v92, 2
    %vm94 = vcmp.lt.s32.totalorder %v92, %v93
    %v95 = vsel %vm94, %v92, %v93
    %v96 = vrot.slane %v95, 1
    %vm97 = vcmp.lt.s32.totalorder %v95, %v96
    %v98 = vsel %vm97, %v95, %v96
    %v99 = vlog2.pop %v68
    %v100 = vmul.f32 %v99, 0.6931472
    %v101 = vmul.f32 %v58, %v55
    %v102 = vmul.f32 %v60, %v56
    %v103 = vsel %vm46, %v102, 0.0
    %v104 = vadd.f32 %v101, %v103
    %v105 = vrot.slane %v104, 4
    %v106 = vadd.f32 %v104, %v105
    %v107 = vrot.slane %v106, 2
    %v108 = vadd.f32 %v106, %v107
    %v109 = vrot.slane %v108, 1
    %v110 = vadd.f32 %v108, %v109
    %v111 = vmul.f32 %v110, %v70
    %v112 = vsub.f32 %v100, %v111
    %v113 = vtanh.pop %v112
    %vm114 = vcmp.eq.s32.totalorder %v43, %v98
    %v115 = vstv %s44
    %vm116 = vcmp.le.f32.partialorder %v112, %v115
    %v117 = vsub.f32 1.0, %v79
    %v118 = vsel %vm114, %v79, %v117
    %v119 = vsub.f32 1.0, %v113
    %v120 = vsel %vm116, %v119, %v113
    %v121 = vmul.f32 %v118, %v120
    %v122 = vlaneseq
    %v123 = vand.u32 %v122, 127
    %s124 = smul.u32 0, 128
    %v125 = vstv %s124
    %v126 = vadd.s32 %v123, %v125
    %v127 = vstv %s45
    %vm128 = vcmp.lt.s32.totalorder %v126, %v127
    %v129 = vsel %vm128, %v121, 0.0
    %v130 = vld [vmem:[#allocation2] sm:$0x1]
    %vm131 = vmxor %vm114, %vm116
    %vm132 = vmxor %vm131, 1
    %v133 = vsel %vm132, %v129, 0.0
    %vm134 = vcmask 1040384
    %v135 = vsel %vm134, %v133, 0.0
    %136 = vadd.xlane.f32.xlu0 %v135
    %v137 = vpop.xlane.xlu0 %136
    %v138 = vadd.f32 %v130, %v137
    %vm139 = vcmask 0
    %140 = vst.msk [vmem:[#allocation2] sm:$0x1] %vm139, %v138
    %v141 = vld [vmem:[#allocation3] sm:$0x1]
    %v142 = vsel %vm134, %v129, 0.0
    %143 = vadd.xlane.f32.xlu0 %v142
    %v144 = vpop.xlane.xlu0 %143
    %v145 = vadd.f32 %v141, %v144
    %146 = vst.msk [vmem:[#allocation3] sm:$0x1] %vm139, %v145
    // Predicated region
    $region26: #{tpu_custom_call.1} parent=1 // pred_check
      %p147 = pneg %p34
    $region27: #{tpu_custom_call.1} parent=1 // pred_check_branch
      %149 = sbr.rel (%p147) target = $region29
    $region28: #{tpu_custom_call.1} parent=1 // pred_region
      %v150 = vld [vmem:[#allocation2] sm:$0x1]
      %v151 = vld [vmem:[#allocation3] sm:$0x1]
      %v152 = vadd.f32 %v151, 1e-10
      %v153 = vrcp.pop %v152
      %v154 = vmul.f32 %v150, %v153
      %v155 = vadd.f32 %v154, 1e-10
      %v156 = vlog2.pop %v155
      %v157 = vmul.f32 %v156, 0.6931472
      %v158 = vmul.f32 %v157, -1.0
      %159 = vst.msk [vmem:[#allocation9] sm:$0x1] %vm139, %v158
    $region29: #{tpu_custom_call.1} parent=1 // pred_fallthru
      _
    // Predicated region
    $region30: #{tpu_custom_call.1} parent=1 // pred_check
      _
    $region31: #{tpu_custom_call.1} parent=1 // pred_check_branch
      %161 = sbr.rel (0) target = $region33
    $region32: #{tpu_custom_call.1} parent=1 // pred_region
      %s163 = ssub.s32 16, 16
      %164 = vsyncadd [#allocation8], %s163
      %s166 = sshll.u32 [#allocation9], 4
      %s167 = int_to_ptr.vmem [resolvable:$true] %s166
      %169 = dma.vmem_to_hbm [thread:$0]  %s167, 16, %s4, [#allocation8]
    $region33: #{tpu_custom_call.1} parent=1 // pred_fallthru
      _
    // Predicated region
    $region34: #{tpu_custom_call.1} parent=1 // pred_check
      _
    $region35: #{tpu_custom_call.1} parent=1 // pred_check_branch
      %171 = sbr.rel (0) target = $region37
    $region36: #{tpu_custom_call.1} parent=1 // pred_region
      %172 = dma.done [#allocation8], 16
    $region37: #{tpu_custom_call.1} parent=1 // pred_fallthru
      _
    %173 = vsyncpa [#allocation7], 1
    %174 = vsyncpa [#allocation8], 1

</llo_original>
